<compile_context>
chip_gen: v5e
topology: v5e:2x2
jax: 0.10.0
libtpu: 0.0.40
codegen_flags: <defaults>
</compile_context>

<pallas_src>
import math

import jax
import jax.numpy as jnp
from jax.experimental import pallas as pl
from jax.experimental.pallas import tpu as pltpu


# Contract lhs dim 1 with rhs dim 1 (i.e. A @ B^T) -- same dimension numbers
# the TPU flash-attention kernels use for q @ k^T.
_TRANS_B_DIMS = (((1,), (1,)), ((), ()))


def critic_kernel(x_ref, w1_ref, b1_ref, w2_ref, b2_ref, w3_ref, b3_ref,
                  out_ref):
    x = x_ref[...]                                                   # (TB, S)
    # Layer 1 kept fully in f32 (raw inputs; preserves 1e-5 accuracy).
    h1 = jnp.tanh(
        jnp.dot(x, w1_ref[...], preferred_element_type=jnp.float32) + b1_ref[...]
    )                                                                # (TB, 64)
    # Layer 2: matmul-operand dtype follows w2 (f32 default, or bf16 pre-cast
    # once in the wrapper -> native bf16 MXU passes, f32 accumulation).
    h2 = jnp.tanh(
        jnp.dot(h1.astype(w2_ref.dtype), w2_ref[...],
                preferred_element_type=jnp.float32) + b2_ref[...]
    )                                                                # (TB, 64)
    # Head (out_features == 1): contract the feature axis of BOTH operands so
    # the result lands as (8, TB) with batch on the lane axis (row 0 is the
    # real output; rows 1..7 come from the zero-padded weight rows).  This
    # makes the output store lane-dense / unmasked instead of a (TB, 1)
    # 1-lane masked store.
    v_rows = jax.lax.dot_general(
        w3_ref[...], h2.astype(w3_ref.dtype), _TRANS_B_DIMS,
        preferred_element_type=jnp.float32)                          # (8, TB)
    out_ref[...] = (v_rows + b3_ref[...]).astype(out_ref.dtype)      # (8, TB)


def _round_up(n, m):
    return ((n + m - 1) // m) * m


def critic_forward(x, params, *, tile_b=2048, bf16_matmul=False):
    """Critic forward pass. x: (B, state_size) f32. Returns (B, 1) f32.

    tile_b: batch rows per grid step (rounded to a multiple of 128; sweep
    1024-8192 for large batches).  bf16_matmul: cast layer-2/head weights to
    bf16 once in the wrapper (recommended on v5e/v6e/v7x for large batches;
    f32 accumulation, looser ~5e-2 tolerance).
    """
    w1, b1, w2, b2, w3, b3 = params
    B, S = x.shape
    H1 = w1.shape[1]
    H2 = w2.shape[1]
    O = w3.shape[1]
    assert O == 1, "Critic head must have a single output"

    x = x.astype(jnp.float32)

    # Batch tile: multiple of 128 (lane-dense output blocks + clean MXU M
    # tiling).  Cap it so the grid has >= 2 steps when the batch is big
    # enough, keeping both v7x TensorCores busy under "parallel" semantics.
    tile_req = max(128, _round_up(int(tile_b), 128))
    b_min = _round_up(B, 128)
    half = max(128, _round_up(-(-b_min // 2), 128))   # ~ceil(b_min/2) to 128
    tile_b_eff = min(tile_req, half)
    padded_b = _round_up(B, tile_b_eff)
    if padded_b != B:
        x = jnp.pad(x, ((0, padded_b - B), (0, 0)))
    grid = (padded_b // tile_b_eff,)

    # Head weight as a (8, H2) row block: row 0 is PyTorch's (1, 64)
    # head.weight, rows 1..7 are zeros (sublane-aligned MXU operand).
    w3_rows = jnp.pad(w3.T, ((0, 7), (0, 0)))                        # (8, H2)
    if bf16_matmul:
        # Pre-cast resident weights once (no per-step VPU converts); layer-1
        # weights and all biases stay f32.
        w2 = w2.astype(jnp.bfloat16)
        w3_rows = w3_rows.astype(jnp.bfloat16)

    # Advisory cost hint so XLA can schedule/overlap this small custom call.
    flops = 2 * padded_b * (S * H1 + H1 * H2 + H2 * O)
    transcendentals = padded_b * (H1 + H2)
    weight_bytes = sum(int(a.size) * a.dtype.itemsize
                       for a in (w1, b1, w2, b2, w3_rows, b3))
    bytes_accessed = padded_b * (S + 8 * O) * 4 + weight_bytes
    cost = pl.CostEstimate(flops=flops, transcendentals=transcendentals,
                           bytes_accessed=bytes_accessed)

    out = pl.pallas_call(
        critic_kernel,
        out_shape=jax.ShapeDtypeStruct((8, padded_b), jnp.float32),
        grid=grid,
        in_specs=[
            # x: tiled over batch, double-buffered across the grid.
            pl.BlockSpec((tile_b_eff, S), lambda i: (i, 0)),
            # Weights/biases: full-array blocks with a constant block index ->
            # loaded once and kept resident in VMEM across all grid steps.
            pl.BlockSpec((S, H1), lambda i: (0, 0)),
            pl.BlockSpec((1, H1), lambda i: (0, 0)),
            pl.BlockSpec((H1, H2), lambda i: (0, 0)),
            pl.BlockSpec((1, H2), lambda i: (0, 0)),
            pl.BlockSpec((8, H2), lambda i: (0, 0)),
            pl.BlockSpec((1, 1), lambda i: (0, 0)),
        ],
        # Lane-dense output: each step writes an (8, TB) block (batch on the
        # 128-lane axis) -> full-width unmasked stores.
        out_specs=pl.BlockSpec((8, tile_b_eff), lambda i: (0, i)),
        compiler_params=pltpu.CompilerParams(
            # Batch tiles are independent -> shard across v7x's 2 TensorCores.
            dimension_semantics=("parallel",),
        ),
        cost_estimate=cost,
    )(x, w1, b1, w2, b2, w3_rows, b3)

    # Row 0 holds the real head output; padded batch columns are sliced off.
    return out[0, :B].reshape(B, 1)


def init_critic_params(key, state_size):
    """Deterministic init mirroring nn.Linear defaults + the head rescale."""
    sizes = [state_size, 64, 64, 1]
    keys = jax.random.split(key, 6)
    params = []
    for i in range(3):
        fan_in, fan_out = sizes[i], sizes[i + 1]
        bound = 1.0 / math.sqrt(fan_in)
        w = jax.random.uniform(keys[2 * i], (fan_in, fan_out),
                               minval=-bound, maxval=bound, dtype=jnp.float32)
        b = jax.random.uniform(keys[2 * i + 1], (1, fan_out),
                               minval=-bound, maxval=bound, dtype=jnp.float32)
        if i == 2:  # head.weight *= 0.1 ; head.bias *= 0.0
            w = w * 0.1
            b = b * 0.0
        params.append(w)
        params.append(b)
    return tuple(params)


def critic_reference(x, params):
    w1, b1, w2, b2, w3, b3 = params
    h1 = jnp.tanh(x @ w1 + b1)
    h2 = jnp.tanh(h1 @ w2 + b2)
    return h2 @ w3 + b3


if __name__ == "__main__":
    key = jax.random.PRNGKey(0)
    k_param, k_x1, k_x2 = jax.random.split(key, 3)

    state_size = 16
    params = init_critic_params(k_param, state_size)

    # Small batch: single grid step (padded to 128 rows, pad sliced off).
    x_small = jax.random.normal(k_x1, (20, state_size), dtype=jnp.float32)
    v_small = critic_forward(x_small, params)
    jax.block_until_ready(v_small)
    assert v_small.shape == (20, 1)
    assert jnp.allclose(v_small, critic_reference(x_small, params),
                        atol=1e-5, rtol=1e-5)

    # Multi-step grid: B=200 with tile_b=128 -> padded to 256, grid=(2,);
    # exercises resident weights across steps + lane-dense output blocks.
    x_grid = jax.random.normal(k_x2, (200, state_size), dtype=jnp.float32)
    v_grid = critic_forward(x_grid, params, tile_b=128)
    jax.block_until_ready(v_grid)
    assert v_grid.shape == (200, 1)
    assert jnp.allclose(v_grid, critic_reference(x_grid, params),
                        atol=1e-5, rtol=1e-5)

    # bf16 matmul-operand path (layers 2/3; weights pre-cast in the wrapper).
    v_bf16 = critic_forward(x_grid, params, tile_b=128, bf16_matmul=True)
    jax.block_until_ready(v_bf16)
    assert jnp.allclose(v_bf16, critic_reference(x_grid, params),
                        atol=5e-2, rtol=5e-2)

    print("KERNEL_OK")
</pallas_src>

<mosaic_0001>
module attributes {stable_mosaic.version = 11 : i64} {
  func.func @critic_kernel(%arg0: i32, %arg1: memref<128x16xf32, #tpu.memory_space<vmem>>, %arg2: memref<16x64xf32, #tpu.memory_space<vmem>>, %arg3: memref<1x64xf32, #tpu.memory_space<vmem>>, %arg4: memref<64x64xf32, #tpu.memory_space<vmem>>, %arg5: memref<1x64xf32, #tpu.memory_space<vmem>>, %arg6: memref<8x64xf32, #tpu.memory_space<vmem>>, %arg7: memref<1x1xf32, #tpu.memory_space<vmem>>, %arg8: memref<8x128xf32, #tpu.memory_space<vmem>>) attributes {dimension_semantics = [#tpu.dimension_semantics<parallel>], iteration_bounds = array<i64: 1>, scalar_prefetch = 0 : i64, scratch_operands = 0 : i64, tpu.core_type = #tpu.core_type<tc>, window_params = [{transform_indices = @transform_0, window_bounds = array<i64: 128, 16>}, {pipeline_mode = #tpu.pipeline_mode<synchronous>, transform_indices = @transform_1, window_bounds = array<i64: 16, 64>}, {pipeline_mode = #tpu.pipeline_mode<synchronous>, transform_indices = @transform_2, window_bounds = array<i64: 1, 64>}, {pipeline_mode = #tpu.pipeline_mode<synchronous>, transform_indices = @transform_3, window_bounds = array<i64: 64, 64>}, {pipeline_mode = #tpu.pipeline_mode<synchronous>, transform_indices = @transform_4, window_bounds = array<i64: 1, 64>}, {pipeline_mode = #tpu.pipeline_mode<synchronous>, transform_indices = @transform_5, window_bounds = array<i64: 8, 64>}, {pipeline_mode = #tpu.pipeline_mode<synchronous>, transform_indices = @transform_6, window_bounds = array<i64: 1, 1>}, {transform_indices = @transform_7, window_bounds = array<i64: 8, 128>}]} {
    %c0 = arith.constant 0 : index
    %c0_0 = arith.constant 0 : index
    %0 = vector.load %arg1[%c0, %c0_0] : memref<128x16xf32, #tpu.memory_space<vmem>>, vector<128x16xf32>
    %c0_1 = arith.constant 0 : index
    %c0_2 = arith.constant 0 : index
    %1 = vector.load %arg2[%c0_1, %c0_2] : memref<16x64xf32, #tpu.memory_space<vmem>>, vector<16x64xf32>
    %cst = arith.constant dense<0.000000e+00> : vector<128x64xf32>
    %2 = tpu.matmul %0, %1, %cst {dimension_numbers = #tpu.dot_dimension_numbers<[1], [0], [0], [1], [0, 0, 1, 1], [], []>} : vector<128x16xf32>, vector<16x64xf32>, vector<128x64xf32> -> vector<128x64xf32>
    %c0_3 = arith.constant 0 : index
    %c0_4 = arith.constant 0 : index
    %3 = vector.load %arg3[%c0_3, %c0_4] : memref<1x64xf32, #tpu.memory_space<vmem>>, vector<1x64xf32>
    %4 = vector.broadcast %3 : vector<1x64xf32> to vector<128x64xf32>
    %5 = arith.addf %2, %4 : vector<128x64xf32>
    %6 = math.tanh %5 : vector<128x64xf32>
    %c0_5 = arith.constant 0 : index
    %c0_6 = arith.constant 0 : index
    %7 = vector.load %arg4[%c0_5, %c0_6] : memref<64x64xf32, #tpu.memory_space<vmem>>, vector<64x64xf32>
    %cst_7 = arith.constant dense<0.000000e+00> : vector<128x64xf32>
    %8 = tpu.matmul %6, %7, %cst_7 {dimension_numbers = #tpu.dot_dimension_numbers<[1], [0], [0], [1], [0, 0, 1, 1], [], []>} : vector<128x64xf32>, vector<64x64xf32>, vector<128x64xf32> -> vector<128x64xf32>
    %c0_8 = arith.constant 0 : index
    %c0_9 = arith.constant 0 : index
    %9 = vector.load %arg5[%c0_8, %c0_9] : memref<1x64xf32, #tpu.memory_space<vmem>>, vector<1x64xf32>
    %10 = vector.broadcast %9 : vector<1x64xf32> to vector<128x64xf32>
    %11 = arith.addf %8, %10 : vector<128x64xf32>
    %12 = math.tanh %11 : vector<128x64xf32>
    %c0_10 = arith.constant 0 : index
    %c0_11 = arith.constant 0 : index
    %13 = vector.load %arg6[%c0_10, %c0_11] : memref<8x64xf32, #tpu.memory_space<vmem>>, vector<8x64xf32>
    %cst_12 = arith.constant dense<0.000000e+00> : vector<8x128xf32>
    %14 = tpu.matmul %13, %12, %cst_12 {dimension_numbers = #tpu.dot_dimension_numbers<[1], [1], [0], [0], [0, 0, 1, 0], [], []>} : vector<8x64xf32>, vector<128x64xf32>, vector<8x128xf32> -> vector<8x128xf32>
    %c0_13 = arith.constant 0 : index
    %c0_14 = arith.constant 0 : index
    %15 = vector.load %arg7[%c0_13, %c0_14] : memref<1x1xf32, #tpu.memory_space<vmem>>, vector<1x1xf32>
    %16 = vector.broadcast %15 : vector<1x1xf32> to vector<8x128xf32>
    %17 = arith.addf %14, %16 : vector<8x128xf32>
    %c0_15 = arith.constant 0 : index
    %c0_16 = arith.constant 0 : index
    %18 = vector.load %arg8[%c0_15, %c0_16] : memref<8x128xf32, #tpu.memory_space<vmem>>, vector<8x128xf32>
    tpu.vector_store %arg8[%c0_15, %c0_16], %17 {strides = array<i32>} : memref<8x128xf32, #tpu.memory_space<vmem>>, vector<8x128xf32>,
    return
  }
  func.func @transform_0(%arg0: i32) -> (i32, i32) {
    %c0_i32 = arith.constant 0 : i32
    %c0_i32_0 = arith.constant 0 : i32
    return %arg0, %c0_i32 : i32, i32
  }
  func.func @transform_1(%arg0: i32) -> (i32, i32) {
    %c0_i32 = arith.constant 0 : i32
    %c0_i32_0 = arith.constant 0 : i32
    %c0_i32_1 = arith.constant 0 : i32
    return %c0_i32, %c0_i32_0 : i32, i32
  }
  func.func @transform_2(%arg0: i32) -> (i32, i32) {
    %c0_i32 = arith.constant 0 : i32
    %c0_i32_0 = arith.constant 0 : i32
    %c0_i32_1 = arith.constant 0 : i32
    return %c0_i32, %c0_i32_0 : i32, i32
  }
  func.func @transform_3(%arg0: i32) -> (i32, i32) {
    %c0_i32 = arith.constant 0 : i32
    %c0_i32_0 = arith.constant 0 : i32
    %c0_i32_1 = arith.constant 0 : i32
    return %c0_i32, %c0_i32_0 : i32, i32
  }
  func.func @transform_4(%arg0: i32) -> (i32, i32) {
    %c0_i32 = arith.constant 0 : i32
    %c0_i32_0 = arith.constant 0 : i32
    %c0_i32_1 = arith.constant 0 : i32
    return %c0_i32, %c0_i32_0 : i32, i32
  }
  func.func @transform_5(%arg0: i32) -> (i32, i32) {
    %c0_i32 = arith.constant 0 : i32
    %c0_i32_0 = arith.constant 0 : i32
    %c0_i32_1 = arith.constant 0 : i32
    return %c0_i32, %c0_i32_0 : i32, i32
  }
  func.func @transform_6(%arg0: i32) -> (i32, i32) {
    %c0_i32 = arith.constant 0 : i32
    %c0_i32_0 = arith.constant 0 : i32
    %c0_i32_1 = arith.constant 0 : i32
    return %c0_i32, %c0_i32_0 : i32, i32
  }
  func.func @transform_7(%arg0: i32) -> (i32, i32) {
    %c0_i32 = arith.constant 0 : i32
    %c0_i32_0 = arith.constant 0 : i32
    return %c0_i32, %arg0 : i32, i32
  }
}

</mosaic_0001>

<llo_original>
// kernel: tpu_custom_call.1
$region0: #{tpu_custom_call.1}
  #allocation0 [shape = 'u32[]', space=smem, size = 0x4, offset = 0x4, fixed_abs, tag = 'smem constant byte address 0x4 - core index']
  #allocation1 [shape = 'u32[72,128]{1,0:T(1,128)}', space=vmem, size = 0x9000, scoped, tag = 'internal scratch']
  #allocation2 [shape = 'f32[1,1]{1,0:T(1,128)S(1)}', space=vmem, size = 0x200, scoped, tag = 'scoped memory for tpu_custom_call.1']
  %s0 = inlined_call_operand.vmem [shape: f32[128,16], index: 0, kind: input, shape index: {}]
  %s1 = inlined_call_operand.vmem [shape: f32[16,64], index: 1, kind: input, shape index: {}]
  %s2 = inlined_call_operand.vmem [shape: f32[1,64], index: 2, kind: input, shape index: {}]
  %s3 = inlined_call_operand.vmem [shape: f32[64,64], index: 3, kind: input, shape index: {}]
  %s4 = inlined_call_operand.vmem [shape: f32[1,64], index: 4, kind: input, shape index: {}]
  %s5 = inlined_call_operand.vmem [shape: f32[8,64], index: 5, kind: input, shape index: {}]
  %s6 = inlined_call_operand.<no memory space> [shape: f32[1,1], index: 6, kind: input, shape index: {}]
  %s7 = inlined_call_operand.hbm [shape: f32[8,128], index: 7, kind: output, shape index: {}]
  %s8 = sld [smem:[#allocation0]]
  $region38: #{tpu_custom_call.1} parent=0
    _
  %s10 = ssub.s32 1, %s8
  %s11 = scalar_select 0, %s10, %s8
  %v12 = vstv %s6
  %13 = vst [vmem:[#allocation2] sm:$0x1] %v12
  $region1: #{tpu_custom_call.1} parent=0
    #allocation3 [shape = 'u8[4096]{0}', space=vmem, size = 0x1000, scoped, tag = 'output window, operand 0, single buffered']
    #allocation4 [shape = 's32[1]{0}', space=sflag, size = 0x4, scoped, tag = 'scoped memory for tpu_custom_call.1']
    %14 = vsyncpa [#allocation4], 0
    // Predicated region
    $region2: #{tpu_custom_call.1} parent=1 // pred_check
      _
    $region3: #{tpu_custom_call.1} parent=1 // pred_check_branch
      %16 = sbr.rel (0) target = $region5
    $region4: #{tpu_custom_call.1} parent=1 // pred_region
      _
    $region5: #{tpu_custom_call.1} parent=1 // pred_fallthru
      _
    // Predicated region
    $region6: #{tpu_custom_call.1} parent=1 // pred_check
      _
    $region7: #{tpu_custom_call.1} parent=1 // pred_check_branch
      %18 = sbr.rel (0) target = $region9
    $region8: #{tpu_custom_call.1} parent=1 // pred_region
      _
    $region9: #{tpu_custom_call.1} parent=1 // pred_fallthru
      _
    // Predicated region
    $region10: #{tpu_custom_call.1} parent=1 // pred_check
      _
    $region11: #{tpu_custom_call.1} parent=1 // pred_check_branch
      %20 = sbr.rel (0) target = $region13
    $region12: #{tpu_custom_call.1} parent=1 // pred_region
      _
    $region13: #{tpu_custom_call.1} parent=1 // pred_fallthru
      _
    // Predicated region
    $region14: #{tpu_custom_call.1} parent=1 // pred_check
      _
    $region15: #{tpu_custom_call.1} parent=1 // pred_check_branch
      %22 = sbr.rel (0) target = $region17
    $region16: #{tpu_custom_call.1} parent=1 // pred_region
      _
    $region17: #{tpu_custom_call.1} parent=1 // pred_fallthru
      _
    // Predicated region
    $region18: #{tpu_custom_call.1} parent=1 // pred_check
      _
    $region19: #{tpu_custom_call.1} parent=1 // pred_check_branch
      %24 = sbr.rel (0) target = $region21
    $region20: #{tpu_custom_call.1} parent=1 // pred_region
      _
    $region21: #{tpu_custom_call.1} parent=1 // pred_fallthru
      _
    // Predicated region
    $region22: #{tpu_custom_call.1} parent=1 // pred_check
      _
    $region23: #{tpu_custom_call.1} parent=1 // pred_check_branch
      %26 = sbr.rel (0) target = $region25
    $region24: #{tpu_custom_call.1} parent=1 // pred_region
      _
    $region25: #{tpu_custom_call.1} parent=1 // pred_fallthru
      _
    // Predicated region
    $region26: #{tpu_custom_call.1} parent=1 // pred_check
      _
    $region27: #{tpu_custom_call.1} parent=1 // pred_check_branch
      %28 = sbr.rel (0) target = $region29
    $region28: #{tpu_custom_call.1} parent=1 // pred_region
      _
    $region29: #{tpu_custom_call.1} parent=1 // pred_fallthru
      _
    %v29 = vld [vmem:[%s0] sm:$0xff]
    %v30 = vld [vmem:[%s0 + $0x8] sm:$0xff]
    %v31 = vld [vmem:[%s0 + $0x10] sm:$0xff]
    %v32 = vld [vmem:[%s0 + $0x18] sm:$0xff]
    %v33 = vld [vmem:[%s0 + $0x20] sm:$0xff]
    %v34 = vld [vmem:[%s0 + $0x28] sm:$0xff]
    %v35 = vld [vmem:[%s0 + $0x30] sm:$0xff]
    %v36 = vld [vmem:[%s0 + $0x38] sm:$0xff]
    %v37 = vld [vmem:[%s0 + $0x40] sm:$0xff]
    %v38 = vld [vmem:[%s0 + $0x48] sm:$0xff]
    %v39 = vld [vmem:[%s0 + $0x50] sm:$0xff]
    %v40 = vld [vmem:[%s0 + $0x58] sm:$0xff]
    %v41 = vld [vmem:[%s0 + $0x60] sm:$0xff]
    %v42 = vld [vmem:[%s0 + $0x68] sm:$0xff]
    %v43 = vld [vmem:[%s0 + $0x70] sm:$0xff]
    %v44 = vld [vmem:[%s0 + $0x78] sm:$0xff]
    %v45 = vld [vmem:[%s1] sm:$0xff]
    %v46 = vld [vmem:[%s1 + $0x8] sm:$0xff]
    %v47 = vld [vmem:[%s2] sm:$0x1]
    %v49 = vperm.slane %v47, 0
    %vm51 = vcmask 130048
    %v53 = vsel %vm51, %v29, 0
    %v56 = vsel %vm51, %v30, 0
    %v59 = vsel %vm51, %v31, 0
    %v62 = vsel %vm51, %v32, 0
    %v65 = vsel %vm51, %v33, 0
    %v68 = vsel %vm51, %v34, 0
    %v71 = vsel %vm51, %v35, 0
    %v74 = vsel %vm51, %v36, 0
    %v77 = vsel %vm51, %v37, 0
    %v80 = vsel %vm51, %v38, 0
    %v83 = vsel %vm51, %v39, 0
    %v86 = vsel %vm51, %v40, 0
    %v89 = vsel %vm51, %v41, 0
    %v92 = vsel %vm51, %v42, 0
    %v95 = vsel %vm51, %v43, 0
    %v98 = vsel %vm51, %v44, 0
    %100 = vmatpush.msra.mxu0 0.0
    %101 = vmatpush.msra.mxu0 0.0
    %102 = vmatpush.msra.mxu0 0.0
    %103 = vmatpush.msra.mxu0 0.0
    %104 = vmatpush.msra.mxu0 0.0
    %105 = vmatpush.msra.mxu0 0.0
    %106 = vmatpush.msra.mxu0 0.0
    %107 = vmatpush.msra.mxu0 0.0
    %108 = vmatpush.msra.mxu0 0.0
    %109 = vmatpush.msra.mxu0 0.0
    %110 = vmatpush.msra.mxu0 0.0
    %111 = vmatpush.msra.mxu0 0.0
    %112 = vmatpush.msra.mxu0 0.0
    %113 = vmatpush.msra.mxu0 0.0
    %114 = vmatpush.msra.mxu0 %v46
    %115 = vmatpush.msra.mxu0 %v45
    %116 = vmatmul.f32.gmra.mxu0 %v53
    %v117 = vpop.f32.mrf.mxu0
    %v118 = vadd.f32 %v49, %v117
    %119 = vmatmul.f32.gmra.mxu0 %v56
    %v120 = vpop.f32.mrf.mxu0
    %v121 = vadd.f32 %v49, %v120
    %122 = vmatmul.f32.gmra.mxu0 %v59
    %v123 = vpop.f32.mrf.mxu0
    %v124 = vadd.f32 %v49, %v123
    %125 = vmatmul.f32.gmra.mxu0 %v62
    %v126 = vpop.f32.mrf.mxu0
    %v127 = vadd.f32 %v49, %v126
    %128 = vmatmul.f32.gmra.mxu0 %v65
    %v129 = vpop.f32.mrf.mxu0
    %v130 = vadd.f32 %v49, %v129
    %131 = vmatmul.f32.gmra.mxu0 %v68
    %v132 = vpop.f32.mrf.mxu0
    %v133 = vadd.f32 %v49, %v132
    %134 = vmatmul.f32.gmra.mxu0 %v71
    %v135 = vpop.f32.mrf.mxu0
    %v136 = vadd.f32 %v49, %v135
    %137 = vmatmul.f32.gmra.mxu0 %v74
    %v138 = vpop.f32.mrf.mxu0
    %v139 = vadd.f32 %v49, %v138
    %140 = vmatmul.f32.gmra.mxu0 %v77
    %v141 = vpop.f32.mrf.mxu0
    %v142 = vadd.f32 %v49, %v141
    %143 = vmatmul.f32.gmra.mxu0 %v80
    %v144 = vpop.f32.mrf.mxu0
    %v145 = vadd.f32 %v49, %v144
    %146 = vmatmul.f32.gmra.mxu0 %v83
    %v147 = vpop.f32.mrf.mxu0
    %v148 = vadd.f32 %v49, %v147
    %149 = vmatmul.f32.gmra.mxu0 %v86
    %v150 = vpop.f32.mrf.mxu0
    %v151 = vadd.f32 %v49, %v150
    %152 = vmatmul.f32.gmra.mxu0 %v89
    %v153 = vpop.f32.mrf.mxu0
    %v154 = vadd.f32 %v49, %v153
    %155 = vmatmul.f32.gmra.mxu0 %v92
    %v156 = vpop.f32.mrf.mxu0
    %v157 = vadd.f32 %v49, %v156
    %158 = vmatmul.f32.gmra.mxu0 %v95
    %v159 = vpop.f32.mrf.mxu0
    %v160 = vadd.f32 %v49, %v159
    %161 = vmatmul.f32.gmra.mxu0 %v98
    %v162 = vpop.f32.mrf.mxu0
    %v163 = vadd.f32 %v49, %v162
    %164 = vdwg.mxu0
    %v165 = vtanh.pop %v118
    %v166 = vtanh.pop %v121
    %v167 = vtanh.pop %v124
    %v168 = vtanh.pop %v127
    %v169 = vtanh.pop %v130
    %v170 = vtanh.pop %v133
    %v171 = vtanh.pop %v136
    %v172 = vtanh.pop %v139
    %v173 = vtanh.pop %v142
    %v174 = vtanh.pop %v145
    %v175 = vtanh.pop %v148
    %v176 = vtanh.pop %v151
    %v177 = vtanh.pop %v154
    %v178 = vtanh.pop %v157
    %v179 = vtanh.pop %v160
    %v180 = vtanh.pop %v163
    %v181 = vld [vmem:[%s3] sm:$0xff]
    %v182 = vld [vmem:[%s3 + $0x8] sm:$0xff]
    %v183 = vld [vmem:[%s3 + $0x10] sm:$0xff]
    %v184 = vld [vmem:[%s3 + $0x18] sm:$0xff]
    %v185 = vld [vmem:[%s3 + $0x20] sm:$0xff]
    %v186 = vld [vmem:[%s3 + $0x28] sm:$0xff]
    %v187 = vld [vmem:[%s3 + $0x30] sm:$0xff]
    %v188 = vld [vmem:[%s3 + $0x38] sm:$0xff]
    %v189 = vld [vmem:[%s4] sm:$0x1]
    %v191 = vperm.slane %v189, 0
    %vm193 = vcmask 523264
    %v195 = vsel %vm193, %v165, 0
    %v198 = vsel %vm193, %v166, 0
    %v201 = vsel %vm193, %v167, 0
    %v204 = vsel %vm193, %v168, 0
    %v207 = vsel %vm193, %v169, 0
    %v210 = vsel %vm193, %v170, 0
    %v213 = vsel %vm193, %v171, 0
    %v216 = vsel %vm193, %v172, 0
    %v219 = vsel %vm193, %v173, 0
    %v222 = vsel %vm193, %v174, 0
    %v225 = vsel %vm193, %v175, 0
    %v228 = vsel %vm193, %v176, 0
    %v231 = vsel %vm193, %v177, 0
    %v234 = vsel %vm193, %v178, 0
    %v237 = vsel %vm193, %v179, 0
    %v240 = vsel %vm193, %v180, 0
    %242 = vmatpush.msra.mxu0 0.0
    %243 = vmatpush.msra.mxu0 0.0
    %244 = vmatpush.msra.mxu0 0.0
    %245 = vmatpush.msra.mxu0 0.0
    %246 = vmatpush.msra.mxu0 0.0
    %247 = vmatpush.msra.mxu0 0.0
    %248 = vmatpush.msra.mxu0 0.0
    %249 = vmatpush.msra.mxu0 0.0
    %250 = vmatpush.msra.mxu0 %v188
    %251 = vmatpush.msra.mxu0 %v187
    %252 = vmatpush.msra.mxu0 %v186
    %253 = vmatpush.msra.mxu0 %v185
    %254 = vmatpush.msra.mxu0 %v184
    %255 = vmatpush.msra.mxu0 %v183
    %256 = vmatpush.msra.mxu0 %v182
    %257 = vmatpush.msra.mxu0 %v181
    %258 = vmatmul.f32.gmra.mxu0 %v195
    %v259 = vpop.f32.mrf.mxu0
    %v260 = vadd.f32 %v191, %v259
    %261 = vmatmul.f32.gmra.mxu0 %v198
    %v262 = vpop.f32.mrf.mxu0
    %v263 = vadd.f32 %v191, %v262
    %264 = vmatmul.f32.gmra.mxu0 %v201
    %v265 = vpop.f32.mrf.mxu0
    %v266 = vadd.f32 %v191, %v265
    %267 = vmatmul.f32.gmra.mxu0 %v204
    %v268 = vpop.f32.mrf.mxu0
    %v269 = vadd.f32 %v191, %v268
    %270 = vmatmul.f32.gmra.mxu0 %v207
    %v271 = vpop.f32.mrf.mxu0
    %v272 = vadd.f32 %v191, %v271
    %273 = vmatmul.f32.gmra.mxu0 %v210
    %v274 = vpop.f32.mrf.mxu0
    %v275 = vadd.f32 %v191, %v274
    %276 = vmatmul.f32.gmra.mxu0 %v213
    %v277 = vpop.f32.mrf.mxu0
    %v278 = vadd.f32 %v191, %v277
    %279 = vmatmul.f32.gmra.mxu0 %v216
    %v280 = vpop.f32.mrf.mxu0
    %v281 = vadd.f32 %v191, %v280
    %282 = vmatmul.f32.gmra.mxu0 %v219
    %v283 = vpop.f32.mrf.mxu0
    %v284 = vadd.f32 %v191, %v283
    %285 = vmatmul.f32.gmra.mxu0 %v222
    %v286 = vpop.f32.mrf.mxu0
    %v287 = vadd.f32 %v191, %v286
    %288 = vmatmul.f32.gmra.mxu0 %v225
    %v289 = vpop.f32.mrf.mxu0
    %v290 = vadd.f32 %v191, %v289
    %291 = vmatmul.f32.gmra.mxu0 %v228
    %v292 = vpop.f32.mrf.mxu0
    %v293 = vadd.f32 %v191, %v292
    %294 = vmatmul.f32.gmra.mxu0 %v231
    %v295 = vpop.f32.mrf.mxu0
    %v296 = vadd.f32 %v191, %v295
    %297 = vmatmul.f32.gmra.mxu0 %v234
    %v298 = vpop.f32.mrf.mxu0
    %v299 = vadd.f32 %v191, %v298
    %300 = vmatmul.f32.gmra.mxu0 %v237
    %v301 = vpop.f32.mrf.mxu0
    %v302 = vadd.f32 %v191, %v301
    %303 = vmatmul.f32.gmra.mxu0 %v240
    %v304 = vpop.f32.mrf.mxu0
    %v305 = vadd.f32 %v191, %v304
    %306 = vdwg.mxu0
    %v307 = vtanh.pop %v260
    %v308 = vtanh.pop %v263
    %v309 = vtanh.pop %v266
    %v310 = vtanh.pop %v269
    %v311 = vtanh.pop %v272
    %v312 = vtanh.pop %v275
    %v313 = vtanh.pop %v278
    %v314 = vtanh.pop %v281
    %v315 = vtanh.pop %v284
    %v316 = vtanh.pop %v287
    %v317 = vtanh.pop %v290
    %v318 = vtanh.pop %v293
    %v319 = vtanh.pop %v296
    %v320 = vtanh.pop %v299
    %v321 = vtanh.pop %v302
    %v322 = vtanh.pop %v305
    %v323 = vld [vmem:[%s5] sm:$0xff]
    %v324 = vld [vmem:[#allocation2] sm:$0x1]
    %v326 = vperm.slane %v324, 0
    %327 = vset.pattern.permute.xlu0 0
    %328 = vperm.xlu0 %327, %v326
    %v329 = vpop.permute.xlu0 %328
    %v332 = vsel %vm193, %v323, 0
    %v335 = vsel %vm193, %v307, 0
    %v338 = vsel %vm193, %v308, 0
    %v341 = vsel %vm193, %v309, 0
    %v344 = vsel %vm193, %v310, 0
    %v347 = vsel %vm193, %v311, 0
    %v350 = vsel %vm193, %v312, 0
    %v353 = vsel %vm193, %v313, 0
    %v356 = vsel %vm193, %v314, 0
    %v359 = vsel %vm193, %v315, 0
    %v362 = vsel %vm193, %v316, 0
    %v365 = vsel %vm193, %v317, 0
    %v368 = vsel %vm193, %v318, 0
    %v371 = vsel %vm193, %v319, 0
    %v374 = vsel %vm193, %v320, 0
    %v377 = vsel %vm193, %v321, 0
    %v380 = vsel %vm193, %v322, 0
    %382 = vmatpush.xpose.msra.mxu0 %v380
    %383 = vmatpush.xpose.msra.mxu0 %v377
    %384 = vmatpush.xpose.msra.mxu0 %v374
    %385 = vmatpush.xpose.msra.mxu0 %v371
    %386 = vmatpush.xpose.msra.mxu0 %v368
    %387 = vmatpush.xpose.msra.mxu0 %v365
    %388 = vmatpush.xpose.msra.mxu0 %v362
    %389 = vmatpush.xpose.msra.mxu0 %v359
    %390 = vmatpush.xpose.msra.mxu0 %v356
    %391 = vmatpush.xpose.msra.mxu0 %v353
    %392 = vmatpush.xpose.msra.mxu0 %v350
    %393 = vmatpush.xpose.msra.mxu0 %v347
    %394 = vmatpush.xpose.msra.mxu0 %v344
    %395 = vmatpush.xpose.msra.mxu0 %v341
    %396 = vmatpush.xpose.msra.mxu0 %v338
    %397 = vmatpush.xpose.msra.mxu0 %v335
    %398 = vmatmul.f32.gmra.mxu0 %v332
    %v399 = vpop.f32.mrf.mxu0
    %v400 = vadd.f32 %v329, %v399
    %401 = vdwg.mxu0
    %402 = vst [vmem:[#allocation3] sm:$0xff] %v400
    // Predicated region
    $region30: #{tpu_custom_call.1} parent=1 // pred_check
      _
    $region31: #{tpu_custom_call.1} parent=1 // pred_check_branch
      %404 = sbr.rel (0) target = $region33
    $region32: #{tpu_custom_call.1} parent=1 // pred_region
      %406 = vsyncadd [#allocation4], 0
      %s408 = sshll.u32 [#allocation3], 4
      %s409 = int_to_ptr.vmem [resolvable:$true] %s408
      %s410 = sshll.u32 %s7, 4
      %s411 = int_to_ptr.hbm [resolvable:$true] %s410
      %413 = dma.vmem_to_hbm [thread:$0]  %s409, 128, %s411, [#allocation4]
    $region33: #{tpu_custom_call.1} parent=1 // pred_fallthru
      _
    // Predicated region
    $region34: #{tpu_custom_call.1} parent=1 // pred_check
      _
    $region35: #{tpu_custom_call.1} parent=1 // pred_check_branch
      %415 = sbr.rel (0) target = $region37
    $region36: #{tpu_custom_call.1} parent=1 // pred_region
      %417 = dma.done [#allocation4], 128
    $region37: #{tpu_custom_call.1} parent=1 // pred_fallthru
      _
    %418 = vsyncpa [#allocation4], 1

</llo_original>
